<compile_context>
chip_gen: v5e
topology: v5e:2x2
jax: 0.10.0
libtpu: 0.0.40
codegen_flags: <defaults>
</compile_context>

<pallas_src>
import jax
import jax.numpy as jnp
from jax.experimental import pallas as pl
from jax.experimental.pallas import tpu as pltpu

LANE = 128          # vreg lane width
ROW_ALIGN = 16      # batch-tile row granularity (covers bf16 sublane packing)


def _round_up(x, m):
    return ((x + m - 1) // m) * m


def _policy_kernel(x_ref, w1_ref, b1_ref, w2_ref, b2_ref, w3_ref, b3_ref, o_ref):
    """Fused MLP forward: logits = relu(relu(x@W1+b1)@W2+b2)@W3+b3.

    x arrives f32 and is cast to bf16 in-register; accumulation, bias-add and
    ReLU are f32.  Only the hidden dim is lane-padded (with zeros), so results
    match the unpadded Linear layers exactly (up to bf16 rounding).
    """
    x = x_ref[...].astype(w1_ref.dtype)                       # [tile, S] bf16

    h1 = jnp.dot(x, w1_ref[...], preferred_element_type=jnp.float32) + b1_ref[...]
    h1 = jnp.maximum(h1, 0.0)

    h2 = jnp.dot(h1.astype(w2_ref.dtype), w2_ref[...],
                 preferred_element_type=jnp.float32) + b2_ref[...]
    h2 = jnp.maximum(h2, 0.0)

    logits = jnp.dot(h2.astype(w3_ref.dtype), w3_ref[...],
                     preferred_element_type=jnp.float32) + b3_ref[...]
    o_ref[...] = logits.astype(o_ref.dtype)                   # [tile, A]


def init_params(key, state_dim, action_dim, hidden_dim=64):
    """nn.Linear-style init; weights stored transposed ([in, out]) so kernel does x@W+b."""
    def linear(k, fan_in, fan_out):
        kw, kb = jax.random.split(k)
        bound = 1.0 / jnp.sqrt(fan_in)
        w = jax.random.uniform(kw, (fan_in, fan_out), jnp.float32, -bound, bound)
        b = jax.random.uniform(kb, (1, fan_out), jnp.float32, -bound, bound)
        return w, b

    k1, k2, k3 = jax.random.split(key, 3)
    w1, b1 = linear(k1, state_dim, hidden_dim)
    w2, b2 = linear(k2, hidden_dim, hidden_dim)
    w3, b3 = linear(k3, hidden_dim, action_dim)
    return dict(w1=w1, b1=b1, w2=w2, b2=b2, w3=w3, b3=b3)


def pack_params(params, compute_dtype=jnp.bfloat16):
    """Zero-pad ONLY the hidden dim to 128 lanes; cast weights to bf16.

    state_dim / action_dim stay at their true sizes (their blocks use the
    full-array extent, which is always legal).  Zero padding of the hidden dim
    keeps the math identical: padded hidden lanes are relu(0+0)=0 and W3's
    padded rows are zero.
    """
    w1, b1, w2, b2, w3, b3 = (params[k] for k in ("w1", "b1", "w2", "b2", "w3", "b3"))
    H = w1.shape[1]
    H_p = _round_up(H, LANE)

    def pad2(x, r, c):
        return jnp.pad(x, ((0, r - x.shape[0]), (0, c - x.shape[1])))

    return dict(
        w1=pad2(w1, w1.shape[0], H_p).astype(compute_dtype),   # [S,   H_p]
        b1=pad2(b1, 1, H_p).astype(jnp.float32),                # [1,   H_p]
        w2=pad2(w2, H_p, H_p).astype(compute_dtype),            # [H_p, H_p]
        b2=pad2(b2, 1, H_p).astype(jnp.float32),                # [1,   H_p]
        w3=pad2(w3, H_p, w3.shape[1]).astype(compute_dtype),    # [H_p, A]
        b3=b3.astype(jnp.float32),                              # [1,   A]
    )


def _jnp_forward(state, packed):
    """Small-batch fast path: same packed weights / same numerics, fused by XLA."""
    w1, b1, w2, b2, w3, b3 = (packed[k] for k in ("w1", "b1", "w2", "b2", "w3", "b3"))
    x = state.astype(w1.dtype)
    h1 = jnp.maximum(jnp.dot(x, w1, preferred_element_type=jnp.float32) + b1, 0.0)
    h2 = jnp.maximum(jnp.dot(h1.astype(w2.dtype), w2,
                             preferred_element_type=jnp.float32) + b2, 0.0)
    return jnp.dot(h2.astype(w3.dtype), w3, preferred_element_type=jnp.float32) + b3


def simple_policy_forward(state, packed, *, tile_b=1024):
    """state: [B, state_dim] f32; packed: pack_params(...). Returns [B, action_dim] f32."""
    w1, b1, w2, b2, w3, b3 = (packed[k] for k in ("w1", "b1", "w2", "b2", "w3", "b3"))
    B, S = state.shape
    A = w3.shape[1]

    # Tiny batches: pallas_call fixed cost dominates -> plain fused XLA path.
    if B <= 16:
        return _jnp_forward(state, packed)

    # Batch tile: big (amortize per-step overhead), multiple of 16 rows, but
    # keep >= 2 grid steps when possible so both v7x TensorCores get work.
    b_aligned = _round_up(B, ROW_ALIGN)
    tile = min(tile_b, b_aligned)
    if tile >= b_aligned and b_aligned >= 2 * ROW_ALIGN:
        tile = b_aligned // 2
    tile = _round_up(tile, ROW_ALIGN)
    grid = pl.cdiv(B, tile)

    # Weights/biases: full-array blocks whose index_map ignores the grid index
    # -> they stay resident in VMEM across batch tiles (no re-DMA per step).
    full = lambda a: pl.BlockSpec(a.shape, lambda i: (0, 0))

    # TODO(synk): consider pipeline_mode=pl.Buffered(3) on the state/output
    # specs if an xprof trace shows exposed DMA at large tiles.
    out = pl.pallas_call(
        _policy_kernel,
        out_shape=jax.ShapeDtypeStruct((B, A), jnp.float32),
        grid=(grid,),
        in_specs=[
            pl.BlockSpec((tile, S), lambda i: (i, 0)),   # unpadded state tile, pipelined
            full(w1), full(b1), full(w2), full(b2), full(w3), full(b3),
        ],
        out_specs=pl.BlockSpec((tile, A), lambda i: (i, 0)),  # unpadded logits tile
        compiler_params=pltpu.CompilerParams(
            dimension_semantics=("parallel",),           # megacore sharding on v7x
        ),
    )(state, w1, b1, w2, b2, w3, b3)

    return out


def reference_forward(state, p):
    """Pure-f32 jnp reference matching the PyTorch module."""
    h1 = jnp.maximum(state @ p["w1"] + p["b1"], 0.0)
    h2 = jnp.maximum(h1 @ p["w2"] + p["b2"], 0.0)
    return h2 @ p["w3"] + p["b3"]


# TODO(synk): get_action_and_log_prob (Categorical sampling / log_prob / entropy)
# is host-side torch.distributions logic, not part of the forward kernel.

if __name__ == "__main__":
    key = jax.random.PRNGKey(0)
    k_param, k_state = jax.random.split(key)

    state_dim, action_dim, hidden_dim = 8, 4, 64
    params = init_params(k_param, state_dim, action_dim, hidden_dim)
    packed = pack_params(params)

    # Batched path: grid of 2 x 256-row tiles, VMEM-resident weights.
    batch = 512
    state = jax.random.normal(k_state, (batch, state_dim), jnp.float32)
    logits = simple_policy_forward(state, packed)
    jax.block_until_ready(logits)

    ref = reference_forward(state, params)
    assert logits.shape == (batch, action_dim)
    # bf16 weights/activations into the MXU -> loose-but-meaningful tolerance.
    assert jnp.allclose(logits, ref, atol=2e-2, rtol=2e-2), (
        float(jnp.max(jnp.abs(logits - ref))))

    # Ragged batch: exercises the clipped boundary block (masked writeback).
    ragged = state[:200]
    logits_r = simple_policy_forward(ragged, packed)
    jax.block_until_ready(logits_r)
    assert logits_r.shape == (200, action_dim)
    assert jnp.allclose(logits_r, ref[:200], atol=2e-2, rtol=2e-2)

    # Tiny batch goes through the fused-XLA fast path (no pallas_call overhead).
    small = state[:8]
    logits_small = simple_policy_forward(small, packed)
    jax.block_until_ready(logits_small)
    assert logits_small.shape == (8, action_dim)
    assert jnp.allclose(logits_small, ref[:8], atol=2e-2, rtol=2e-2)

    print("KERNEL_OK")
</pallas_src>

<mosaic_0001>
module attributes {stable_mosaic.version = 11 : i64} {
  func.func @_policy_kernel(%arg0: i32, %arg1: memref<256x8xf32, #tpu.memory_space<vmem>>, %arg2: memref<8x128xbf16, #tpu.memory_space<vmem>>, %arg3: memref<1x128xf32, #tpu.memory_space<vmem>>, %arg4: memref<128x128xbf16, #tpu.memory_space<vmem>>, %arg5: memref<1x128xf32, #tpu.memory_space<vmem>>, %arg6: memref<128x4xbf16, #tpu.memory_space<vmem>>, %arg7: memref<1x4xf32, #tpu.memory_space<vmem>>, %arg8: memref<256x4xf32, #tpu.memory_space<vmem>>) attributes {dimension_semantics = [#tpu.dimension_semantics<parallel>], iteration_bounds = array<i64: 2>, scalar_prefetch = 0 : i64, scratch_operands = 0 : i64, tpu.core_type = #tpu.core_type<tc>, window_params = [{transform_indices = @transform_0, window_bounds = array<i64: 256, 8>}, {pipeline_mode = #tpu.pipeline_mode<synchronous>, transform_indices = @transform_1, window_bounds = array<i64: 8, 128>}, {pipeline_mode = #tpu.pipeline_mode<synchronous>, transform_indices = @transform_2, window_bounds = array<i64: 1, 128>}, {pipeline_mode = #tpu.pipeline_mode<synchronous>, transform_indices = @transform_3, window_bounds = array<i64: 128, 128>}, {pipeline_mode = #tpu.pipeline_mode<synchronous>, transform_indices = @transform_4, window_bounds = array<i64: 1, 128>}, {pipeline_mode = #tpu.pipeline_mode<synchronous>, transform_indices = @transform_5, window_bounds = array<i64: 128, 4>}, {pipeline_mode = #tpu.pipeline_mode<synchronous>, transform_indices = @transform_6, window_bounds = array<i64: 1, 4>}, {transform_indices = @transform_7, window_bounds = array<i64: 256, 4>}]} {
    %c0 = arith.constant 0 : index
    %c0_0 = arith.constant 0 : index
    %0 = vector.load %arg1[%c0, %c0_0] : memref<256x8xf32, #tpu.memory_space<vmem>>, vector<256x8xf32>
    %1 = arith.truncf %0 : vector<256x8xf32> to vector<256x8xbf16>
    %c0_1 = arith.constant 0 : index
    %c0_2 = arith.constant 0 : index
    %2 = vector.load %arg2[%c0_1, %c0_2] : memref<8x128xbf16, #tpu.memory_space<vmem>>, vector<8x128xbf16>
    %cst = arith.constant dense<0.000000e+00> : vector<256x128xf32>
    %3 = tpu.matmul %1, %2, %cst {dimension_numbers = #tpu.dot_dimension_numbers<[1], [0], [0], [1], [0, 0, 1, 1], [], []>} : vector<256x8xbf16>, vector<8x128xbf16>, vector<256x128xf32> -> vector<256x128xf32>
    %c0_3 = arith.constant 0 : index
    %c0_4 = arith.constant 0 : index
    %4 = vector.load %arg3[%c0_3, %c0_4] : memref<1x128xf32, #tpu.memory_space<vmem>>, vector<1x128xf32>
    %5 = vector.broadcast %4 : vector<1x128xf32> to vector<256x128xf32>
    %6 = arith.addf %3, %5 : vector<256x128xf32>
    %cst_5 = arith.constant 0.000000e+00 : f32
    %7 = vector.broadcast %cst_5 : f32 to vector<256x128xf32>
    %8 = arith.maximumf %6, %7 : vector<256x128xf32>
    %9 = arith.truncf %8 : vector<256x128xf32> to vector<256x128xbf16>
    %c0_6 = arith.constant 0 : index
    %c0_7 = arith.constant 0 : index
    %10 = vector.load %arg4[%c0_6, %c0_7] : memref<128x128xbf16, #tpu.memory_space<vmem>>, vector<128x128xbf16>
    %cst_8 = arith.constant dense<0.000000e+00> : vector<256x128xf32>
    %11 = tpu.matmul %9, %10, %cst_8 {dimension_numbers = #tpu.dot_dimension_numbers<[1], [0], [0], [1], [0, 0, 1, 1], [], []>} : vector<256x128xbf16>, vector<128x128xbf16>, vector<256x128xf32> -> vector<256x128xf32>
    %c0_9 = arith.constant 0 : index
    %c0_10 = arith.constant 0 : index
    %12 = vector.load %arg5[%c0_9, %c0_10] : memref<1x128xf32, #tpu.memory_space<vmem>>, vector<1x128xf32>
    %13 = vector.broadcast %12 : vector<1x128xf32> to vector<256x128xf32>
    %14 = arith.addf %11, %13 : vector<256x128xf32>
    %cst_11 = arith.constant 0.000000e+00 : f32
    %15 = vector.broadcast %cst_11 : f32 to vector<256x128xf32>
    %16 = arith.maximumf %14, %15 : vector<256x128xf32>
    %17 = arith.truncf %16 : vector<256x128xf32> to vector<256x128xbf16>
    %c0_12 = arith.constant 0 : index
    %c0_13 = arith.constant 0 : index
    %18 = vector.load %arg6[%c0_12, %c0_13] : memref<128x4xbf16, #tpu.memory_space<vmem>>, vector<128x4xbf16>
    %cst_14 = arith.constant dense<0.000000e+00> : vector<256x4xf32>
    %19 = tpu.matmul %17, %18, %cst_14 {dimension_numbers = #tpu.dot_dimension_numbers<[1], [0], [0], [1], [0, 0, 1, 1], [], []>} : vector<256x128xbf16>, vector<128x4xbf16>, vector<256x4xf32> -> vector<256x4xf32>
    %c0_15 = arith.constant 0 : index
    %c0_16 = arith.constant 0 : index
    %20 = vector.load %arg7[%c0_15, %c0_16] : memref<1x4xf32, #tpu.memory_space<vmem>>, vector<1x4xf32>
    %21 = vector.broadcast %20 : vector<1x4xf32> to vector<256x4xf32>
    %22 = arith.addf %19, %21 : vector<256x4xf32>
    %c0_17 = arith.constant 0 : index
    %c0_18 = arith.constant 0 : index
    %23 = vector.load %arg8[%c0_17, %c0_18] : memref<256x4xf32, #tpu.memory_space<vmem>>, vector<256x4xf32>
    tpu.vector_store %arg8[%c0_17, %c0_18], %22 {strides = array<i32>} : memref<256x4xf32, #tpu.memory_space<vmem>>, vector<256x4xf32>,
    return
  }
  func.func @transform_0(%arg0: i32) -> (i32, i32) {
    %c0_i32 = arith.constant 0 : i32
    %c0_i32_0 = arith.constant 0 : i32
    return %arg0, %c0_i32 : i32, i32
  }
  func.func @transform_1(%arg0: i32) -> (i32, i32) {
    %c0_i32 = arith.constant 0 : i32
    %c0_i32_0 = arith.constant 0 : i32
    %c0_i32_1 = arith.constant 0 : i32
    return %c0_i32, %c0_i32_0 : i32, i32
  }
  func.func @transform_2(%arg0: i32) -> (i32, i32) {
    %c0_i32 = arith.constant 0 : i32
    %c0_i32_0 = arith.constant 0 : i32
    %c0_i32_1 = arith.constant 0 : i32
    return %c0_i32, %c0_i32_0 : i32, i32
  }
  func.func @transform_3(%arg0: i32) -> (i32, i32) {
    %c0_i32 = arith.constant 0 : i32
    %c0_i32_0 = arith.constant 0 : i32
    %c0_i32_1 = arith.constant 0 : i32
    return %c0_i32, %c0_i32_0 : i32, i32
  }
  func.func @transform_4(%arg0: i32) -> (i32, i32) {
    %c0_i32 = arith.constant 0 : i32
    %c0_i32_0 = arith.constant 0 : i32
    %c0_i32_1 = arith.constant 0 : i32
    return %c0_i32, %c0_i32_0 : i32, i32
  }
  func.func @transform_5(%arg0: i32) -> (i32, i32) {
    %c0_i32 = arith.constant 0 : i32
    %c0_i32_0 = arith.constant 0 : i32
    %c0_i32_1 = arith.constant 0 : i32
    return %c0_i32, %c0_i32_0 : i32, i32
  }
  func.func @transform_6(%arg0: i32) -> (i32, i32) {
    %c0_i32 = arith.constant 0 : i32
    %c0_i32_0 = arith.constant 0 : i32
    %c0_i32_1 = arith.constant 0 : i32
    return %c0_i32, %c0_i32_0 : i32, i32
  }
  func.func @transform_7(%arg0: i32) -> (i32, i32) {
    %c0_i32 = arith.constant 0 : i32
    %c0_i32_0 = arith.constant 0 : i32
    return %arg0, %c0_i32 : i32, i32
  }
}

</mosaic_0001>

<llo_original>
// kernel: tpu_custom_call.1
$region0: #{tpu_custom_call.1}
  #allocation0 [shape = 'u32[]', space=smem, size = 0x4, offset = 0x4, fixed_abs, tag = 'smem constant byte address 0x4 - core index']
  #allocation1 [shape = 'u32[72,128]{1,0:T(1,128)}', space=vmem, size = 0x9000, scoped, tag = 'internal scratch']
  %s0 = inlined_call_operand.vmem [shape: f32[512,8], index: 0, kind: input, shape index: {}]
  %s1 = inlined_call_operand.vmem [shape: bf16[8,128], index: 1, kind: input, shape index: {}]
  %s2 = inlined_call_operand.vmem [shape: f32[1,128], index: 2, kind: input, shape index: {}]
  %s3 = inlined_call_operand.vmem [shape: bf16[128,128], index: 3, kind: input, shape index: {}]
  %s4 = inlined_call_operand.vmem [shape: f32[1,128], index: 4, kind: input, shape index: {}]
  %s5 = inlined_call_operand.vmem [shape: bf16[128,4], index: 5, kind: input, shape index: {}]
  %s6 = inlined_call_operand.vmem [shape: f32[1,4], index: 6, kind: input, shape index: {}]
  %s7 = inlined_call_operand.vmem [shape: f32[512,4], index: 7, kind: output, shape index: {}]
  %s8 = sld [smem:[#allocation0]]
  $region61: #{tpu_custom_call.1} parent=0
    _
  %s10 = ssub.s32 1, %s8
  %s11 = scalar_select 0, %s10, %s8
  loop: start=0, step=1, limit=4
  $region2: #{tpu_custom_call.1} parent=0 // loop_pre_header
    _
  $region3: #{tpu_custom_call.1} parent=0 // loop_header
    %s13 = sphi 0, %s17
    %p14 = scmp.ge.s32.totalorder %s13, 4
    %s23 = sphi 0, %s25
    %s26 = sphi 0, %s23
    %s27 = sphi 0, %s26
    %s43 = sphi 0, %s27
    %s47 = sphi 0, %s47
    %s49 = sphi 0, %s47
    %s50 = sphi 0, %s49
    %s64 = sphi 0, %s50
    %s68 = sphi 0, %s68
    %s70 = sphi 0, %s68
    %s71 = sphi 0, %s70
    %s85 = sphi 0, %s71
    %s89 = sphi 0, %s89
    %s91 = sphi 0, %s89
    %s92 = sphi 0, %s91
    %s106 = sphi 0, %s92
    %s110 = sphi 0, %s110
    %s112 = sphi 0, %s110
    %s113 = sphi 0, %s112
    %s127 = sphi 0, %s113
    %s131 = sphi 0, %s131
    %s133 = sphi 0, %s131
    %s134 = sphi 0, %s133
    %s148 = sphi 0, %s134
    %s152 = sphi 0, %s152
    %s154 = sphi 0, %s152
    %s155 = sphi 0, %s154
    %s169 = sphi 0, %s155
    %s175 = sphi 0, %s177
    %s178 = sphi 0, %s175
    %s179 = sphi 0, %s178
    %s195 = sphi 0, %s179
  $region4: #{tpu_custom_call.1} parent=0 // loop_header_branch
    %16 = sbr.rel (%p14) target = $region8
  $region5: #{tpu_custom_call.1} parent=0 // loop_body
    %s18 = ssub.s32 %s13, 1
    %s19 = ssub.s32 %s13, 2
    %s20 = sadd.s32 %s13, 1
    %s21 = ssub.s32 %s13, %s20
    %p22 = scmp.eq.s32.totalorder %s21, 0
    %s24 = sadd.s32 %s23, 1
    %s25 = scalar_select %p22, %s23, %s24
    %p28 = pneg %p22
    %p29 = scmp.eq.s32.totalorder %s13, 1
    %p30 = por %p28, %p29
    %p31 = scmp.ne.s32.totalorder %s23, %s26
    %p32 = scmp.eq.s32.totalorder %s13, 0
    %p33 = por %p31, %p32
    %p34 = scmp.ne.s32.totalorder %s23, %s26
    %p35 = scmp.eq.s32.totalorder %s18, 1
    %p36 = por %p34, %p35
    %p37 = scmp.ne.s32.totalorder %s26, %s27
    %p38 = scmp.eq.s32.totalorder %s18, 0
    %p39 = por %p37, %p38
    %p40 = scmp.ne.s32.totalorder %s26, %s27
    %p41 = scmp.eq.s32.totalorder %s19, 1
    %p42 = por %p40, %p41
    %p44 = scmp.ne.s32.totalorder %s27, %s43
    %p45 = scmp.eq.s32.totalorder %s19, 0
    %p46 = por %p44, %p45
    %s48 = sadd.s32 %s47, 1
    %p51 = scmp.eq.s32.totalorder %s13, 1
    %p52 = scmp.ne.s32.totalorder %s47, %s49
    %p53 = scmp.eq.s32.totalorder %s13, 0
    %p54 = por %p52, %p53
    %p55 = scmp.ne.s32.totalorder %s47, %s49
    %p56 = scmp.eq.s32.totalorder %s18, 1
    %p57 = por %p55, %p56
    %p58 = scmp.ne.s32.totalorder %s49, %s50
    %p59 = scmp.eq.s32.totalorder %s18, 0
    %p60 = por %p58, %p59
    %p61 = scmp.ne.s32.totalorder %s49, %s50
    %p62 = scmp.eq.s32.totalorder %s19, 1
    %p63 = por %p61, %p62
    %p65 = scmp.ne.s32.totalorder %s50, %s64
    %p66 = scmp.eq.s32.totalorder %s19, 0
    %p67 = por %p65, %p66
    %s69 = sadd.s32 %s68, 1
    %p72 = scmp.eq.s32.totalorder %s13, 1
    %p73 = scmp.ne.s32.totalorder %s68, %s70
    %p74 = scmp.eq.s32.totalorder %s13, 0
    %p75 = por %p73, %p74
    %p76 = scmp.ne.s32.totalorder %s68, %s70
    %p77 = scmp.eq.s32.totalorder %s18, 1
    %p78 = por %p76, %p77
    %p79 = scmp.ne.s32.totalorder %s70, %s71
    %p80 = scmp.eq.s32.totalorder %s18, 0
    %p81 = por %p79, %p80
    %p82 = scmp.ne.s32.totalorder %s70, %s71
    %p83 = scmp.eq.s32.totalorder %s19, 1
    %p84 = por %p82, %p83
    %p86 = scmp.ne.s32.totalorder %s71, %s85
    %p87 = scmp.eq.s32.totalorder %s19, 0
    %p88 = por %p86, %p87
    %s90 = sadd.s32 %s89, 1
    %p93 = scmp.eq.s32.totalorder %s13, 1
    %p94 = scmp.ne.s32.totalorder %s89, %s91
    %p95 = scmp.eq.s32.totalorder %s13, 0
    %p96 = por %p94, %p95
    %p97 = scmp.ne.s32.totalorder %s89, %s91
    %p98 = scmp.eq.s32.totalorder %s18, 1
    %p99 = por %p97, %p98
    %p100 = scmp.ne.s32.totalorder %s91, %s92
    %p101 = scmp.eq.s32.totalorder %s18, 0
    %p102 = por %p100, %p101
    %p103 = scmp.ne.s32.totalorder %s91, %s92
    %p104 = scmp.eq.s32.totalorder %s19, 1
    %p105 = por %p103, %p104
    %p107 = scmp.ne.s32.totalorder %s92, %s106
    %p108 = scmp.eq.s32.totalorder %s19, 0
    %p109 = por %p107, %p108
    %s111 = sadd.s32 %s110, 1
    %p114 = scmp.eq.s32.totalorder %s13, 1
    %p115 = scmp.ne.s32.totalorder %s110, %s112
    %p116 = scmp.eq.s32.totalorder %s13, 0
    %p117 = por %p115, %p116
    %p118 = scmp.ne.s32.totalorder %s110, %s112
    %p119 = scmp.eq.s32.totalorder %s18, 1
    %p120 = por %p118, %p119
    %p121 = scmp.ne.s32.totalorder %s112, %s113
    %p122 = scmp.eq.s32.totalorder %s18, 0
    %p123 = por %p121, %p122
    %p124 = scmp.ne.s32.totalorder %s112, %s113
    %p125 = scmp.eq.s32.totalorder %s19, 1
    %p126 = por %p124, %p125
    %p128 = scmp.ne.s32.totalorder %s113, %s127
    %p129 = scmp.eq.s32.totalorder %s19, 0
    %p130 = por %p128, %p129
    %s132 = sadd.s32 %s131, 1
    %p135 = scmp.eq.s32.totalorder %s13, 1
    %p136 = scmp.ne.s32.totalorder %s131, %s133
    %p137 = scmp.eq.s32.totalorder %s13, 0
    %p138 = por %p136, %p137
    %p139 = scmp.ne.s32.totalorder %s131, %s133
    %p140 = scmp.eq.s32.totalorder %s18, 1
    %p141 = por %p139, %p140
    %p142 = scmp.ne.s32.totalorder %s133, %s134
    %p143 = scmp.eq.s32.totalorder %s18, 0
    %p144 = por %p142, %p143
    %p145 = scmp.ne.s32.totalorder %s133, %s134
    %p146 = scmp.eq.s32.totalorder %s19, 1
    %p147 = por %p145, %p146
    %p149 = scmp.ne.s32.totalorder %s134, %s148
    %p150 = scmp.eq.s32.totalorder %s19, 0
    %p151 = por %p149, %p150
    %s153 = sadd.s32 %s152, 1
    %p156 = scmp.eq.s32.totalorder %s13, 1
    %p157 = scmp.ne.s32.totalorder %s152, %s154
    %p158 = scmp.eq.s32.totalorder %s13, 0
    %p159 = por %p157, %p158
    %p160 = scmp.ne.s32.totalorder %s152, %s154
    %p161 = scmp.eq.s32.totalorder %s18, 1
    %p162 = por %p160, %p161
    %p163 = scmp.ne.s32.totalorder %s154, %s155
    %p164 = scmp.eq.s32.totalorder %s18, 0
    %p165 = por %p163, %p164
    %p166 = scmp.ne.s32.totalorder %s154, %s155
    %p167 = scmp.eq.s32.totalorder %s19, 1
    %p168 = por %p166, %p167
    %p170 = scmp.ne.s32.totalorder %s155, %s169
    %p171 = scmp.eq.s32.totalorder %s19, 0
    %p172 = por %p170, %p171
    %s173 = ssub.s32 %s13, %s20
    %p174 = scmp.eq.s32.totalorder %s173, 0
    %s176 = sadd.s32 %s175, 1
    %s177 = scalar_select %p174, %s175, %s176
    %p180 = pneg %p174
    %p181 = scmp.eq.s32.totalorder %s13, 1
    %p182 = por %p180, %p181
    %p183 = scmp.ne.s32.totalorder %s175, %s178
    %p184 = scmp.eq.s32.totalorder %s13, 0
    %p185 = por %p183, %p184
    %p186 = scmp.ne.s32.totalorder %s175, %s178
    %p187 = scmp.eq.s32.totalorder %s18, 1
    %p188 = por %p186, %p187
    %p189 = scmp.ne.s32.totalorder %s178, %s179
    %p190 = scmp.eq.s32.totalorder %s18, 0
    %p191 = por %p189, %p190
    %p192 = scmp.ne.s32.totalorder %s178, %s179
    %p193 = scmp.eq.s32.totalorder %s19, 1
    %p194 = por %p192, %p193
    %p196 = scmp.ne.s32.totalorder %s179, %s195
    %p197 = scmp.eq.s32.totalorder %s19, 0
    %p198 = por %p196, %p197
    %p199 = scmp.le.s32.totalorder 1, %s13
    %p200 = scmp.lt.s32.totalorder %s13, 3
    %p201 = pnand %p199, %p200
    %p202 = pneg %p201
    // Predicated region
    $region9: #{tpu_custom_call.1} parent=5 // pred_check
      _
    $region10: #{tpu_custom_call.1} parent=5 // pred_check_branch
      %204 = sbr.rel (%p201) target = $region12
    $region11: #{tpu_custom_call.1} parent=5 // pred_region
      %s205 = ssub.s32 %s13, 1
      // Predicated region
      $region13: #{tpu_custom_call.1} parent=11 // pred_check
        %p206 = pneg %p60
      $region14: #{tpu_custom_call.1} parent=11 // pred_check_branch
        %208 = sbr.rel (%p206) target = $region16
      $region15: #{tpu_custom_call.1} parent=11 // pred_region
        _
      $region16: #{tpu_custom_call.1} parent=11 // pred_fallthru
        _
      // Predicated region
      $region17: #{tpu_custom_call.1} parent=11 // pred_check
        %p209 = pneg %p81
      $region18: #{tpu_custom_call.1} parent=11 // pred_check_branch
        %211 = sbr.rel (%p209) target = $region20
      $region19: #{tpu_custom_call.1} parent=11 // pred_region
        _
      $region20: #{tpu_custom_call.1} parent=11 // pred_fallthru
        _
      // Predicated region
      $region21: #{tpu_custom_call.1} parent=11 // pred_check
        %p212 = pneg %p102
      $region22: #{tpu_custom_call.1} parent=11 // pred_check_branch
        %214 = sbr.rel (%p212) target = $region24
      $region23: #{tpu_custom_call.1} parent=11 // pred_region
        _
      $region24: #{tpu_custom_call.1} parent=11 // pred_fallthru
        _
      // Predicated region
      $region25: #{tpu_custom_call.1} parent=11 // pred_check
        %p215 = pneg %p123
      $region26: #{tpu_custom_call.1} parent=11 // pred_check_branch
        %217 = sbr.rel (%p215) target = $region28
      $region27: #{tpu_custom_call.1} parent=11 // pred_region
        _
      $region28: #{tpu_custom_call.1} parent=11 // pred_fallthru
        _
      // Predicated region
      $region29: #{tpu_custom_call.1} parent=11 // pred_check
        %p218 = pneg %p144
      $region30: #{tpu_custom_call.1} parent=11 // pred_check_branch
        %220 = sbr.rel (%p218) target = $region32
      $region31: #{tpu_custom_call.1} parent=11 // pred_region
        _
      $region32: #{tpu_custom_call.1} parent=11 // pred_fallthru
        _
      // Predicated region
      $region33: #{tpu_custom_call.1} parent=11 // pred_check
        %p221 = pneg %p165
      $region34: #{tpu_custom_call.1} parent=11 // pred_check_branch
        %223 = sbr.rel (%p221) target = $region36
      $region35: #{tpu_custom_call.1} parent=11 // pred_region
        _
      $region36: #{tpu_custom_call.1} parent=11 // pred_fallthru
        _
    $region12: #{tpu_custom_call.1} parent=5 // pred_fallthru
      _
    %p224 = scmp.lt.s32.totalorder %s13, 2
    // Predicated region
    $region37: #{tpu_custom_call.1} parent=5 // pred_check
      %p225 = pneg %p224
    $region38: #{tpu_custom_call.1} parent=5 // pred_check_branch
      %227 = sbr.rel (%p225) target = $region40
    $region39: #{tpu_custom_call.1} parent=5 // pred_region
      // Predicated region
      $region41: #{tpu_custom_call.1} parent=39 // pred_check
        %p228 = pneg %p33
      $region42: #{tpu_custom_call.1} parent=39 // pred_check_branch
        %230 = sbr.rel (%p228) target = $region44
      $region43: #{tpu_custom_call.1} parent=39 // pred_region
        %s231 = smul.u32 32, %s13
        %p232 = scmp.lt.s32.totalorder %s231, 63
        %s233 = scalar_select %p232, %s231, 63
        %s234 = smul.addr %s233, 8
        %s235 = scalar_lea.vmem %s0, %s234
        %s236 = smul.u32 32, %s13
      $region44: #{tpu_custom_call.1} parent=39 // pred_fallthru
        _
    $region40: #{tpu_custom_call.1} parent=5 // pred_fallthru
      _
    %p237 = scmp.le.s32.totalorder 1, %s13
    %p238 = scmp.lt.s32.totalorder %s13, 3
    %p239 = pnand %p237, %p238
    %p240 = pneg %p239
    // Predicated region
    $region45: #{tpu_custom_call.1} parent=5 // pred_check
      _
    $region46: #{tpu_custom_call.1} parent=5 // pred_check_branch
      %242 = sbr.rel (%p239) target = $region48
    $region47: #{tpu_custom_call.1} parent=5 // pred_region
      %s243 = ssub.s32 %s13, 1
      %s244 = smul.u32 32, %s18
      %p245 = scmp.lt.s32.totalorder %s244, 63
      %s246 = scalar_select %p245, %s244, 63
      %s247 = smul.addr %s246, 8
      %s248 = scalar_lea.vmem %s0, %s247
      %p249 = pneg %p39
      %p250 = pneg %p36
      %p251 = pneg %p60
      %p252 = pneg %p57
      %p253 = pneg %p81
      %p254 = pneg %p78
      %p255 = pneg %p102
      %p256 = pneg %p99
      %p257 = pneg %p123
      %p258 = pneg %p120
      %p259 = pneg %p144
      %p260 = pneg %p141
      %p261 = pneg %p165
      %p262 = pneg %p162
      %p263 = pneg %p191
      %p264 = pneg %p188
      %s265 = smul.u32 32, %s18
      %p266 = scmp.lt.s32.totalorder %s265, 63
      %s267 = scalar_select %p266, %s265, 63
      %s268 = smul.addr %s267, 8
      %s269 = scalar_lea.vmem %s7, %s268
      %s270 = smul.u32 32, %s18
      %p271 = scmp.lt.s32.totalorder %s270, 63
      %s272 = scalar_select %p271, %s270, 63
      %s273 = smul.addr %s272, 8
      %s274 = scalar_lea.vmem %s0, %s273
      %s275 = smul.u32 32, %s18
      %s276 = smul.u32 32, %s18
      %p277 = scmp.lt.s32.totalorder %s276, 63
      %s278 = scalar_select %p277, %s276, 63
      %s279 = smul.addr %s278, 8
      %s280 = scalar_lea.vmem %s7, %s279
      %s281 = smul.u32 32, %s18
      %v283 = vld [vmem:[%s274] sm:$0xff]
      %v284 = vld [vmem:[%s274 + $0x8] sm:$0xff]
      %v285 = vld [vmem:[%s274 + $0x10] sm:$0xff]
      %v286 = vld [vmem:[%s274 + $0x18] sm:$0xff]
      %v287 = vld [vmem:[%s274 + $0x20] sm:$0xff]
      %v288 = vld [vmem:[%s274 + $0x28] sm:$0xff]
      %v289 = vld [vmem:[%s274 + $0x30] sm:$0xff]
      %v290 = vld [vmem:[%s274 + $0x38] sm:$0xff]
      %v291 = vld [vmem:[%s274 + $0x40] sm:$0xff]
      %v292 = vld [vmem:[%s274 + $0x48] sm:$0xff]
      %v293 = vld [vmem:[%s274 + $0x50] sm:$0xff]
      %v294 = vld [vmem:[%s274 + $0x58] sm:$0xff]
      %v295 = vld [vmem:[%s274 + $0x60] sm:$0xff]
      %v296 = vld [vmem:[%s274 + $0x68] sm:$0xff]
      %v297 = vld [vmem:[%s274 + $0x70] sm:$0xff]
      %v298 = vld [vmem:[%s274 + $0x78] sm:$0xff]
      %v299 = vld [vmem:[%s274 + $0x80] sm:$0xff]
      %v300 = vld [vmem:[%s274 + $0x88] sm:$0xff]
      %v301 = vld [vmem:[%s274 + $0x90] sm:$0xff]
      %v302 = vld [vmem:[%s274 + $0x98] sm:$0xff]
      %v303 = vld [vmem:[%s274 + $0xa0] sm:$0xff]
      %v304 = vld [vmem:[%s274 + $0xa8] sm:$0xff]
      %v305 = vld [vmem:[%s274 + $0xb0] sm:$0xff]
      %v306 = vld [vmem:[%s274 + $0xb8] sm:$0xff]
      %v307 = vld [vmem:[%s274 + $0xc0] sm:$0xff]
      %v308 = vld [vmem:[%s274 + $0xc8] sm:$0xff]
      %v309 = vld [vmem:[%s274 + $0xd0] sm:$0xff]
      %v310 = vld [vmem:[%s274 + $0xd8] sm:$0xff]
      %v311 = vld [vmem:[%s274 + $0xe0] sm:$0xff]
      %v312 = vld [vmem:[%s274 + $0xe8] sm:$0xff]
      %v313 = vld [vmem:[%s274 + $0xf0] sm:$0xff]
      %v314 = vld [vmem:[%s274 + $0xf8] sm:$0xff]
      %v315 = vpack.c.bf16 %v284, %v283
      %v316 = vpack.c.bf16 %v286, %v285
      %v317 = vpack.c.bf16 %v288, %v287
      %v318 = vpack.c.bf16 %v290, %v289
      %v319 = vpack.c.bf16 %v292, %v291
      %v320 = vpack.c.bf16 %v294, %v293
      %v321 = vpack.c.bf16 %v296, %v295
      %v322 = vpack.c.bf16 %v298, %v297
      %v323 = vpack.c.bf16 %v300, %v299
      %v324 = vpack.c.bf16 %v302, %v301
      %v325 = vpack.c.bf16 %v304, %v303
      %v326 = vpack.c.bf16 %v306, %v305
      %v327 = vpack.c.bf16 %v308, %v307
      %v328 = vpack.c.bf16 %v310, %v309
      %v329 = vpack.c.bf16 %v312, %v311
      %v330 = vpack.c.bf16 %v314, %v313
      %v331 = vld [vmem:[%s1] sm:$0xf]
      %v332 = vld [vmem:[%s2] sm:$0x1]
      %v334 = vperm.slane %v332, 0
      %vm336 = vcmask 64512
      %v338 = vsel %vm336, %v315, 0
      %v341 = vsel %vm336, %v316, 0
      %v344 = vsel %vm336, %v317, 0
      %v347 = vsel %vm336, %v318, 0
      %v350 = vsel %vm336, %v319, 0
      %v353 = vsel %vm336, %v320, 0
      %v356 = vsel %vm336, %v321, 0
      %v359 = vsel %vm336, %v322, 0
      %v362 = vsel %vm336, %v323, 0
      %v365 = vsel %vm336, %v324, 0
      %v368 = vsel %vm336, %v325, 0
      %v371 = vsel %vm336, %v326, 0
      %v374 = vsel %vm336, %v327, 0
      %v377 = vsel %vm336, %v328, 0
      %v380 = vsel %vm336, %v329, 0
      %v383 = vsel %vm336, %v330, 0
      %vm385 = vcmask 1043456
      %v387 = vsel %vm385, %v331, 0
      %389 = vmatpush.bf16.msra.mxu0 0
      %390 = vmatpush.bf16.msra.mxu0 0
      %391 = vmatpush.bf16.msra.mxu0 0
      %392 = vmatpush.bf16.msra.mxu0 0
      %393 = vmatpush.bf16.msra.mxu0 0
      %394 = vmatpush.bf16.msra.mxu0 0
      %395 = vmatpush.bf16.msra.mxu0 0
      %396 = vmatpush.bf16.msra.mxu0 %v387
      %397 = vmatmul.bf16.gmra.mxu0 %v338
      %v398 = vpop.f32.mrf.mxu0
      %v399 = vadd.f32 %v334, %v398
      %v400 = vpop.f32.mrf.mxu0
      %v401 = vadd.f32 %v334, %v400
      %402 = vmatmul.bf16.gmra.mxu0 %v341
      %v403 = vpop.f32.mrf.mxu0
      %v404 = vadd.f32 %v334, %v403
      %v405 = vpop.f32.mrf.mxu0
      %v406 = vadd.f32 %v334, %v405
      %407 = vmatmul.bf16.gmra.mxu0 %v344
      %v408 = vpop.f32.mrf.mxu0
      %v409 = vadd.f32 %v334, %v408
      %v410 = vpop.f32.mrf.mxu0
      %v411 = vadd.f32 %v334, %v410
      %412 = vmatmul.bf16.gmra.mxu0 %v347
      %v413 = vpop.f32.mrf.mxu0
      %v414 = vadd.f32 %v334, %v413
      %v415 = vpop.f32.mrf.mxu0
      %v416 = vadd.f32 %v334, %v415
      %417 = vmatmul.bf16.gmra.mxu0 %v350
      %v418 = vpop.f32.mrf.mxu0
      %v419 = vadd.f32 %v334, %v418
      %v420 = vpop.f32.mrf.mxu0
      %v421 = vadd.f32 %v334, %v420
      %422 = vmatmul.bf16.gmra.mxu0 %v353
      %v423 = vpop.f32.mrf.mxu0
      %v424 = vadd.f32 %v334, %v423
      %v425 = vpop.f32.mrf.mxu0
      %v426 = vadd.f32 %v334, %v425
      %427 = vmatmul.bf16.gmra.mxu0 %v356
      %v428 = vpop.f32.mrf.mxu0
      %v429 = vadd.f32 %v334, %v428
      %v430 = vpop.f32.mrf.mxu0
      %v431 = vadd.f32 %v334, %v430
      %432 = vmatmul.bf16.gmra.mxu0 %v359
      %v433 = vpop.f32.mrf.mxu0
      %v434 = vadd.f32 %v334, %v433
      %v435 = vpop.f32.mrf.mxu0
      %v436 = vadd.f32 %v334, %v435
      %437 = vmatmul.bf16.gmra.mxu0 %v362
      %v438 = vpop.f32.mrf.mxu0
      %v439 = vadd.f32 %v334, %v438
      %v440 = vpop.f32.mrf.mxu0
      %v441 = vadd.f32 %v334, %v440
      %442 = vmatmul.bf16.gmra.mxu0 %v365
      %v443 = vpop.f32.mrf.mxu0
      %v444 = vadd.f32 %v334, %v443
      %v445 = vpop.f32.mrf.mxu0
      %v446 = vadd.f32 %v334, %v445
      %447 = vmatmul.bf16.gmra.mxu0 %v368
      %v448 = vpop.f32.mrf.mxu0
      %v449 = vadd.f32 %v334, %v448
      %v450 = vpop.f32.mrf.mxu0
      %v451 = vadd.f32 %v334, %v450
      %452 = vmatmul.bf16.gmra.mxu0 %v371
      %v453 = vpop.f32.mrf.mxu0
      %v454 = vadd.f32 %v334, %v453
      %v455 = vpop.f32.mrf.mxu0
      %v456 = vadd.f32 %v334, %v455
      %457 = vmatmul.bf16.gmra.mxu0 %v374
      %v458 = vpop.f32.mrf.mxu0
      %v459 = vadd.f32 %v334, %v458
      %v460 = vpop.f32.mrf.mxu0
      %v461 = vadd.f32 %v334, %v460
      %462 = vmatmul.bf16.gmra.mxu0 %v377
      %v463 = vpop.f32.mrf.mxu0
      %v464 = vadd.f32 %v334, %v463
      %v465 = vpop.f32.mrf.mxu0
      %v466 = vadd.f32 %v334, %v465
      %467 = vmatmul.bf16.gmra.mxu0 %v380
      %v468 = vpop.f32.mrf.mxu0
      %v469 = vadd.f32 %v334, %v468
      %v470 = vpop.f32.mrf.mxu0
      %v471 = vadd.f32 %v334, %v470
      %472 = vmatmul.bf16.gmra.mxu0 %v383
      %v473 = vpop.f32.mrf.mxu0
      %v474 = vadd.f32 %v334, %v473
      %v475 = vpop.f32.mrf.mxu0
      %v476 = vadd.f32 %v334, %v475
      %477 = vdwg.mxu0
      %v478 = vmax.f32 %v399, 0.0
      %v479 = vmax.f32 %v401, 0.0
      %v480 = vmax.f32 %v404, 0.0
      %v481 = vmax.f32 %v406, 0.0
      %v482 = vmax.f32 %v409, 0.0
      %v483 = vmax.f32 %v411, 0.0
      %v484 = vmax.f32 %v414, 0.0
      %v485 = vmax.f32 %v416, 0.0
      %v486 = vmax.f32 %v419, 0.0
      %v487 = vmax.f32 %v421, 0.0
      %v488 = vmax.f32 %v424, 0.0
      %v489 = vmax.f32 %v426, 0.0
      %v490 = vmax.f32 %v429, 0.0
      %v491 = vmax.f32 %v431, 0.0
      %v492 = vmax.f32 %v434, 0.0
      %v493 = vmax.f32 %v436, 0.0
      %v494 = vmax.f32 %v439, 0.0
      %v495 = vmax.f32 %v441, 0.0
      %v496 = vmax.f32 %v444, 0.0
      %v497 = vmax.f32 %v446, 0.0
      %v498 = vmax.f32 %v449, 0.0
      %v499 = vmax.f32 %v451, 0.0
      %v500 = vmax.f32 %v454, 0.0
      %v501 = vmax.f32 %v456, 0.0
      %v502 = vmax.f32 %v459, 0.0
      %v503 = vmax.f32 %v461, 0.0
      %v504 = vmax.f32 %v464, 0.0
      %v505 = vmax.f32 %v466, 0.0
      %v506 = vmax.f32 %v469, 0.0
      %v507 = vmax.f32 %v471, 0.0
      %v508 = vmax.f32 %v474, 0.0
      %v509 = vmax.f32 %v476, 0.0
      %v510 = vpack.c.bf16 %v479, %v478
      %v511 = vpack.c.bf16 %v481, %v480
      %v512 = vpack.c.bf16 %v483, %v482
      %v513 = vpack.c.bf16 %v485, %v484
      %v514 = vpack.c.bf16 %v487, %v486
      %v515 = vpack.c.bf16 %v489, %v488
      %v516 = vpack.c.bf16 %v491, %v490
      %v517 = vpack.c.bf16 %v493, %v492
      %v518 = vpack.c.bf16 %v495, %v494
      %v519 = vpack.c.bf16 %v497, %v496
      %v520 = vpack.c.bf16 %v499, %v498
      %v521 = vpack.c.bf16 %v501, %v500
      %v522 = vpack.c.bf16 %v503, %v502
      %v523 = vpack.c.bf16 %v505, %v504
      %v524 = vpack.c.bf16 %v507, %v506
      %v525 = vpack.c.bf16 %v509, %v508
      %v526 = vld [vmem:[%s3] sm:$0xf]
      %v527 = vld [vmem:[%s3 + $0x4] sm:$0xf]
      %v528 = vld [vmem:[%s3 + $0x8] sm:$0xf]
      %v529 = vld [vmem:[%s3 + $0xc] sm:$0xf]
      %v530 = vld [vmem:[%s3 + $0x10] sm:$0xf]
      %v531 = vld [vmem:[%s3 + $0x14] sm:$0xf]
      %v532 = vld [vmem:[%s3 + $0x18] sm:$0xf]
      %v533 = vld [vmem:[%s3 + $0x1c] sm:$0xf]
      %v534 = vld [vmem:[%s3 + $0x20] sm:$0xf]
      %v535 = vld [vmem:[%s3 + $0x24] sm:$0xf]
      %v536 = vld [vmem:[%s3 + $0x28] sm:$0xf]
      %v537 = vld [vmem:[%s3 + $0x2c] sm:$0xf]
      %v538 = vld [vmem:[%s3 + $0x30] sm:$0xf]
      %v539 = vld [vmem:[%s3 + $0x34] sm:$0xf]
      %v540 = vld [vmem:[%s3 + $0x38] sm:$0xf]
      %v541 = vld [vmem:[%s3 + $0x3c] sm:$0xf]
      %v542 = vld [vmem:[%s4] sm:$0x1]
      %v544 = vperm.slane %v542, 0
      %v562 = vunpack.c.l.b16 %v526
      %v563 = vunpack.c.l.b16 %v527
      %v564 = vunpack.c.l.b16 %v528
      %v565 = vunpack.c.l.b16 %v529
      %v566 = vunpack.c.l.b16 %v530
      %v567 = vunpack.c.l.b16 %v531
      %v568 = vunpack.c.l.b16 %v532
      %v569 = vunpack.c.l.b16 %v533
      %v570 = vunpack.c.l.b16 %v534
      %v571 = vunpack.c.l.b16 %v535
      %v572 = vunpack.c.l.b16 %v536
      %v573 = vunpack.c.l.b16 %v537
      %v574 = vunpack.c.l.b16 %v538
      %v575 = vunpack.c.l.b16 %v539
      %v576 = vunpack.c.l.b16 %v540
      %v577 = vunpack.c.l.b16 %v541
      %v578 = vpack.c.b16 %v563, %v562
      %v579 = vpack.c.b16 %v565, %v564
      %v580 = vpack.c.b16 %v567, %v566
      %v581 = vpack.c.b16 %v569, %v568
      %v582 = vpack.c.b16 %v571, %v570
      %v583 = vpack.c.b16 %v573, %v572
      %v584 = vpack.c.b16 %v575, %v574
      %v585 = vpack.c.b16 %v577, %v576
      %594 = vmatpush.bf16.msra.mxu0 %v585
      %595 = vmatpush.bf16.msra.mxu0 %v584
      %596 = vmatpush.bf16.msra.mxu0 %v583
      %597 = vmatpush.bf16.msra.mxu0 %v582
      %598 = vmatpush.bf16.msra.mxu0 %v581
      %599 = vmatpush.bf16.msra.mxu0 %v580
      %600 = vmatpush.bf16.msra.mxu0 %v579
      %601 = vmatpush.bf16.msra.mxu0 %v578
      %602 = vmatmul.bf16.gmra.mxu0 %v510
      %v603 = vpop.f32.mrf.mxu0
      %v604 = vadd.f32 %v544, %v603
      %v605 = vpop.f32.mrf.mxu0
      %v606 = vadd.f32 %v544, %v605
      %607 = vmatmul.bf16.gmra.mxu0 %v511
      %v608 = vpop.f32.mrf.mxu0
      %v609 = vadd.f32 %v544, %v608
      %v610 = vpop.f32.mrf.mxu0
      %v611 = vadd.f32 %v544, %v610
      %612 = vmatmul.bf16.gmra.mxu0 %v512
      %v613 = vpop.f32.mrf.mxu0
      %v614 = vadd.f32 %v544, %v613
      %v615 = vpop.f32.mrf.mxu0
      %v616 = vadd.f32 %v544, %v615
      %617 = vmatmul.bf16.gmra.mxu0 %v513
      %v618 = vpop.f32.mrf.mxu0
      %v619 = vadd.f32 %v544, %v618
      %v620 = vpop.f32.mrf.mxu0
      %v621 = vadd.f32 %v544, %v620
      %622 = vmatmul.bf16.gmra.mxu0 %v514
      %v623 = vpop.f32.mrf.mxu0
      %v624 = vadd.f32 %v544, %v623
      %v625 = vpop.f32.mrf.mxu0
      %v626 = vadd.f32 %v544, %v625
      %627 = vmatmul.bf16.gmra.mxu0 %v515
      %v628 = vpop.f32.mrf.mxu0
      %v629 = vadd.f32 %v544, %v628
      %v630 = vpop.f32.mrf.mxu0
      %v631 = vadd.f32 %v544, %v630
      %632 = vmatmul.bf16.gmra.mxu0 %v516
      %v633 = vpop.f32.mrf.mxu0
      %v634 = vadd.f32 %v544, %v633
      %v635 = vpop.f32.mrf.mxu0
      %v636 = vadd.f32 %v544, %v635
      %637 = vmatmul.bf16.gmra.mxu0 %v517
      %v638 = vpop.f32.mrf.mxu0
      %v639 = vadd.f32 %v544, %v638
      %v640 = vpop.f32.mrf.mxu0
      %v641 = vadd.f32 %v544, %v640
      %642 = vmatmul.bf16.gmra.mxu0 %v518
      %v643 = vpop.f32.mrf.mxu0
      %v644 = vadd.f32 %v544, %v643
      %v645 = vpop.f32.mrf.mxu0
      %v646 = vadd.f32 %v544, %v645
      %647 = vmatmul.bf16.gmra.mxu0 %v519
      %v648 = vpop.f32.mrf.mxu0
      %v649 = vadd.f32 %v544, %v648
      %v650 = vpop.f32.mrf.mxu0
      %v651 = vadd.f32 %v544, %v650
      %652 = vmatmul.bf16.gmra.mxu0 %v520
      %v653 = vpop.f32.mrf.mxu0
      %v654 = vadd.f32 %v544, %v653
      %v655 = vpop.f32.mrf.mxu0
      %v656 = vadd.f32 %v544, %v655
      %657 = vmatmul.bf16.gmra.mxu0 %v521
      %v658 = vpop.f32.mrf.mxu0
      %v659 = vadd.f32 %v544, %v658
      %v660 = vpop.f32.mrf.mxu0
      %v661 = vadd.f32 %v544, %v660
      %662 = vmatmul.bf16.gmra.mxu0 %v522
      %v663 = vpop.f32.mrf.mxu0
      %v664 = vadd.f32 %v544, %v663
      %v665 = vpop.f32.mrf.mxu0
      %v666 = vadd.f32 %v544, %v665
      %667 = vmatmul.bf16.gmra.mxu0 %v523
      %v668 = vpop.f32.mrf.mxu0
      %v669 = vadd.f32 %v544, %v668
      %v670 = vpop.f32.mrf.mxu0
      %v671 = vadd.f32 %v544, %v670
      %672 = vmatmul.bf16.gmra.mxu0 %v524
      %v673 = vpop.f32.mrf.mxu0
      %v674 = vadd.f32 %v544, %v673
      %v675 = vpop.f32.mrf.mxu0
      %v676 = vadd.f32 %v544, %v675
      %677 = vmatmul.bf16.gmra.mxu0 %v525
      %v678 = vpop.f32.mrf.mxu0
      %v679 = vadd.f32 %v544, %v678
      %v680 = vpop.f32.mrf.mxu0
      %v681 = vadd.f32 %v544, %v680
      %682 = vdwg.mxu0
      %v683 = vmax.f32 %v604, 0.0
      %v684 = vmax.f32 %v606, 0.0
      %v685 = vmax.f32 %v609, 0.0
      %v686 = vmax.f32 %v611, 0.0
      %v687 = vmax.f32 %v614, 0.0
      %v688 = vmax.f32 %v616, 0.0
      %v689 = vmax.f32 %v619, 0.0
      %v690 = vmax.f32 %v621, 0.0
      %v691 = vmax.f32 %v624, 0.0
      %v692 = vmax.f32 %v626, 0.0
      %v693 = vmax.f32 %v629, 0.0
      %v694 = vmax.f32 %v631, 0.0
      %v695 = vmax.f32 %v634, 0.0
      %v696 = vmax.f32 %v636, 0.0
      %v697 = vmax.f32 %v639, 0.0
      %v698 = vmax.f32 %v641, 0.0
      %v699 = vmax.f32 %v644, 0.0
      %v700 = vmax.f32 %v646, 0.0
      %v701 = vmax.f32 %v649, 0.0
      %v702 = vmax.f32 %v651, 0.0
      %v703 = vmax.f32 %v654, 0.0
      %v704 = vmax.f32 %v656, 0.0
      %v705 = vmax.f32 %v659, 0.0
      %v706 = vmax.f32 %v661, 0.0
      %v707 = vmax.f32 %v664, 0.0
      %v708 = vmax.f32 %v666, 0.0
      %v709 = vmax.f32 %v669, 0.0
      %v710 = vmax.f32 %v671, 0.0
      %v711 = vmax.f32 %v674, 0.0
      %v712 = vmax.f32 %v676, 0.0
      %v713 = vmax.f32 %v679, 0.0
      %v714 = vmax.f32 %v681, 0.0
      %v715 = vpack.c.bf16 %v684, %v683
      %v716 = vpack.c.bf16 %v686, %v685
      %v717 = vpack.c.bf16 %v688, %v687
      %v718 = vpack.c.bf16 %v690, %v689
      %v719 = vpack.c.bf16 %v692, %v691
      %v720 = vpack.c.bf16 %v694, %v693
      %v721 = vpack.c.bf16 %v696, %v695
      %v722 = vpack.c.bf16 %v698, %v697
      %v723 = vpack.c.bf16 %v700, %v699
      %v724 = vpack.c.bf16 %v702, %v701
      %v725 = vpack.c.bf16 %v704, %v703
      %v726 = vpack.c.bf16 %v706, %v705
      %v727 = vpack.c.bf16 %v708, %v707
      %v728 = vpack.c.bf16 %v710, %v709
      %v729 = vpack.c.bf16 %v712, %v711
      %v730 = vpack.c.bf16 %v714, %v713
      %v731 = vld [vmem:[%s5] sm:$0xf]
      %v732 = vld [vmem:[%s5 + $0x4] sm:$0xf]
      %v733 = vld [vmem:[%s5 + $0x8] sm:$0xf]
      %v734 = vld [vmem:[%s5 + $0xc] sm:$0xf]
      %v735 = vld [vmem:[%s5 + $0x10] sm:$0xf]
      %v736 = vld [vmem:[%s5 + $0x14] sm:$0xf]
      %v737 = vld [vmem:[%s5 + $0x18] sm:$0xf]
      %v738 = vld [vmem:[%s5 + $0x1c] sm:$0xf]
      %v739 = vld [vmem:[%s5 + $0x20] sm:$0xf]
      %v740 = vld [vmem:[%s5 + $0x24] sm:$0xf]
      %v741 = vld [vmem:[%s5 + $0x28] sm:$0xf]
      %v742 = vld [vmem:[%s5 + $0x2c] sm:$0xf]
      %v743 = vld [vmem:[%s5 + $0x30] sm:$0xf]
      %v744 = vld [vmem:[%s5 + $0x34] sm:$0xf]
      %v745 = vld [vmem:[%s5 + $0x38] sm:$0xf]
      %v746 = vld [vmem:[%s5 + $0x3c] sm:$0xf]
      %v747 = vld [vmem:[%s6] sm:$0x1]
      %v749 = vperm.slane %v747, 0
      %v767 = vunpack.c.l.b16 %v731
      %v768 = vunpack.c.l.b16 %v732
      %v769 = vunpack.c.l.b16 %v733
      %v770 = vunpack.c.l.b16 %v734
      %v771 = vunpack.c.l.b16 %v735
      %v772 = vunpack.c.l.b16 %v736
      %v773 = vunpack.c.l.b16 %v737
      %v774 = vunpack.c.l.b16 %v738
      %v775 = vunpack.c.l.b16 %v739
      %v776 = vunpack.c.l.b16 %v740
      %v777 = vunpack.c.l.b16 %v741
      %v778 = vunpack.c.l.b16 %v742
      %v779 = vunpack.c.l.b16 %v743
      %v780 = vunpack.c.l.b16 %v744
      %v781 = vunpack.c.l.b16 %v745
      %v782 = vunpack.c.l.b16 %v746
      %v783 = vpack.c.b16 %v768, %v767
      %v784 = vpack.c.b16 %v770, %v769
      %v785 = vpack.c.b16 %v772, %v771
      %v786 = vpack.c.b16 %v774, %v773
      %v787 = vpack.c.b16 %v776, %v775
      %v788 = vpack.c.b16 %v778, %v777
      %v789 = vpack.c.b16 %v780, %v779
      %v790 = vpack.c.b16 %v782, %v781
      %799 = vmatpush.bf16.msra.mxu0 %v790
      %800 = vmatpush.bf16.msra.mxu0 %v789
      %801 = vmatpush.bf16.msra.mxu0 %v788
      %802 = vmatpush.bf16.msra.mxu0 %v787
      %803 = vmatpush.bf16.msra.mxu0 %v786
      %804 = vmatpush.bf16.msra.mxu0 %v785
      %805 = vmatpush.bf16.msra.mxu0 %v784
      %806 = vmatpush.bf16.msra.mxu0 %v783
      %807 = vmatmul.bf16.gmra.mxu0 %v715
      %v808 = vpop.f32.mrf.mxu0
      %v809 = vadd.f32 %v749, %v808
      %v810 = vpop.f32.mrf.mxu0
      %v811 = vadd.f32 %v749, %v810
      %812 = vmatmul.bf16.gmra.mxu0 %v716
      %v813 = vpop.f32.mrf.mxu0
      %v814 = vadd.f32 %v749, %v813
      %v815 = vpop.f32.mrf.mxu0
      %v816 = vadd.f32 %v749, %v815
      %817 = vmatmul.bf16.gmra.mxu0 %v717
      %v818 = vpop.f32.mrf.mxu0
      %v819 = vadd.f32 %v749, %v818
      %v820 = vpop.f32.mrf.mxu0
      %v821 = vadd.f32 %v749, %v820
      %822 = vmatmul.bf16.gmra.mxu0 %v718
      %v823 = vpop.f32.mrf.mxu0
      %v824 = vadd.f32 %v749, %v823
      %v825 = vpop.f32.mrf.mxu0
      %v826 = vadd.f32 %v749, %v825
      %827 = vmatmul.bf16.gmra.mxu0 %v719
      %v828 = vpop.f32.mrf.mxu0
      %v829 = vadd.f32 %v749, %v828
      %v830 = vpop.f32.mrf.mxu0
      %v831 = vadd.f32 %v749, %v830
      %832 = vmatmul.bf16.gmra.mxu0 %v720
      %v833 = vpop.f32.mrf.mxu0
      %v834 = vadd.f32 %v749, %v833
      %v835 = vpop.f32.mrf.mxu0
      %v836 = vadd.f32 %v749, %v835
      %837 = vmatmul.bf16.gmra.mxu0 %v721
      %v838 = vpop.f32.mrf.mxu0
      %v839 = vadd.f32 %v749, %v838
      %v840 = vpop.f32.mrf.mxu0
      %v841 = vadd.f32 %v749, %v840
      %842 = vmatmul.bf16.gmra.mxu0 %v722
      %v843 = vpop.f32.mrf.mxu0
      %v844 = vadd.f32 %v749, %v843
      %v845 = vpop.f32.mrf.mxu0
      %v846 = vadd.f32 %v749, %v845
      %847 = vmatmul.bf16.gmra.mxu0 %v723
      %v848 = vpop.f32.mrf.mxu0
      %v849 = vadd.f32 %v749, %v848
      %v850 = vpop.f32.mrf.mxu0
      %v851 = vadd.f32 %v749, %v850
      %852 = vmatmul.bf16.gmra.mxu0 %v724
      %v853 = vpop.f32.mrf.mxu0
      %v854 = vadd.f32 %v749, %v853
      %v855 = vpop.f32.mrf.mxu0
      %v856 = vadd.f32 %v749, %v855
      %857 = vmatmul.bf16.gmra.mxu0 %v725
      %v858 = vpop.f32.mrf.mxu0
      %v859 = vadd.f32 %v749, %v858
      %v860 = vpop.f32.mrf.mxu0
      %v861 = vadd.f32 %v749, %v860
      %862 = vmatmul.bf16.gmra.mxu0 %v726
      %v863 = vpop.f32.mrf.mxu0
      %v864 = vadd.f32 %v749, %v863
      %v865 = vpop.f32.mrf.mxu0
      %v866 = vadd.f32 %v749, %v865
      %867 = vmatmul.bf16.gmra.mxu0 %v727
      %v868 = vpop.f32.mrf.mxu0
      %v869 = vadd.f32 %v749, %v868
      %v870 = vpop.f32.mrf.mxu0
      %v871 = vadd.f32 %v749, %v870
      %872 = vmatmul.bf16.gmra.mxu0 %v728
      %v873 = vpop.f32.mrf.mxu0
      %v874 = vadd.f32 %v749, %v873
      %v875 = vpop.f32.mrf.mxu0
      %v876 = vadd.f32 %v749, %v875
      %877 = vmatmul.bf16.gmra.mxu0 %v729
      %v878 = vpop.f32.mrf.mxu0
      %v879 = vadd.f32 %v749, %v878
      %v880 = vpop.f32.mrf.mxu0
      %v881 = vadd.f32 %v749, %v880
      %882 = vmatmul.bf16.gmra.mxu0 %v730
      %v883 = vpop.f32.mrf.mxu0
      %v884 = vadd.f32 %v749, %v883
      %v885 = vpop.f32.mrf.mxu0
      %v886 = vadd.f32 %v749, %v885
      %887 = vdwg.mxu0
      %vm888 = vcmask 31744
      %889 = vst.msk [vmem:[%s280] sm:$0xff] %vm888, %v809
      %890 = vst.msk [vmem:[%s280 + $0x8] sm:$0xff] %vm888, %v811
      %891 = vst.msk [vmem:[%s280 + $0x10] sm:$0xff] %vm888, %v814
      %892 = vst.msk [vmem:[%s280 + $0x18] sm:$0xff] %vm888, %v816
      %893 = vst.msk [vmem:[%s280 + $0x20] sm:$0xff] %vm888, %v819
      %894 = vst.msk [vmem:[%s280 + $0x28] sm:$0xff] %vm888, %v821
      %895 = vst.msk [vmem:[%s280 + $0x30] sm:$0xff] %vm888, %v824
      %896 = vst.msk [vmem:[%s280 + $0x38] sm:$0xff] %vm888, %v826
      %897 = vst.msk [vmem:[%s280 + $0x40] sm:$0xff] %vm888, %v829
      %898 = vst.msk [vmem:[%s280 + $0x48] sm:$0xff] %vm888, %v831
      %899 = vst.msk [vmem:[%s280 + $0x50] sm:$0xff] %vm888, %v834
      %900 = vst.msk [vmem:[%s280 + $0x58] sm:$0xff] %vm888, %v836
      %901 = vst.msk [vmem:[%s280 + $0x60] sm:$0xff] %vm888, %v839
      %902 = vst.msk [vmem:[%s280 + $0x68] sm:$0xff] %vm888, %v841
      %903 = vst.msk [vmem:[%s280 + $0x70] sm:$0xff] %vm888, %v844
      %904 = vst.msk [vmem:[%s280 + $0x78] sm:$0xff] %vm888, %v846
      %905 = vst.msk [vmem:[%s280 + $0x80] sm:$0xff] %vm888, %v849
      %906 = vst.msk [vmem:[%s280 + $0x88] sm:$0xff] %vm888, %v851
      %907 = vst.msk [vmem:[%s280 + $0x90] sm:$0xff] %vm888, %v854
      %908 = vst.msk [vmem:[%s280 + $0x98] sm:$0xff] %vm888, %v856
      %909 = vst.msk [vmem:[%s280 + $0xa0] sm:$0xff] %vm888, %v859
      %910 = vst.msk [vmem:[%s280 + $0xa8] sm:$0xff] %vm888, %v861
      %911 = vst.msk [vmem:[%s280 + $0xb0] sm:$0xff] %vm888, %v864
      %912 = vst.msk [vmem:[%s280 + $0xb8] sm:$0xff] %vm888, %v866
      %913 = vst.msk [vmem:[%s280 + $0xc0] sm:$0xff] %vm888, %v869
      %914 = vst.msk [vmem:[%s280 + $0xc8] sm:$0xff] %vm888, %v871
      %915 = vst.msk [vmem:[%s280 + $0xd0] sm:$0xff] %vm888, %v874
      %916 = vst.msk [vmem:[%s280 + $0xd8] sm:$0xff] %vm888, %v876
      %917 = vst.msk [vmem:[%s280 + $0xe0] sm:$0xff] %vm888, %v879
      %918 = vst.msk [vmem:[%s280 + $0xe8] sm:$0xff] %vm888, %v881
      %919 = vst.msk [vmem:[%s280 + $0xf0] sm:$0xff] %vm888, %v884
      %920 = vst.msk [vmem:[%s280 + $0xf8] sm:$0xff] %vm888, %v886
      %s921 = smul.u32 32, %s18
      %p922 = scmp.lt.s32.totalorder %s921, 63
      %s923 = scalar_select %p922, %s921, 63
      %s924 = smul.addr %s923, 8
      %s925 = scalar_lea.vmem %s7, %s924
      // Predicated region
      $region49: #{tpu_custom_call.1} parent=47 // pred_check
        %p926 = pneg %p188
      $region50: #{tpu_custom_call.1} parent=47 // pred_check_branch
        %928 = sbr.rel (%p926) target = $region52
      $region51: #{tpu_custom_call.1} parent=47 // pred_region
        %s929 = smul.u32 32, %s18
      $region52: #{tpu_custom_call.1} parent=47 // pred_fallthru
        _
    $region48: #{tpu_custom_call.1} parent=5 // pred_fallthru
      _
    %p930 = scmp.le.s32.totalorder 2, %s13
    // Predicated region
    $region53: #{tpu_custom_call.1} parent=5 // pred_check
      %p931 = pneg %p930
    $region54: #{tpu_custom_call.1} parent=5 // pred_check_branch
      %933 = sbr.rel (%p931) target = $region56
    $region55: #{tpu_custom_call.1} parent=5 // pred_region
      %s934 = ssub.s32 %s13, 2
      // Predicated region
      $region57: #{tpu_custom_call.1} parent=55 // pred_check
        %p935 = pneg %p194
      $region58: #{tpu_custom_call.1} parent=55 // pred_check_branch
        %937 = sbr.rel (%p935) target = $region60
      $region59: #{tpu_custom_call.1} parent=55 // pred_region
        %s938 = smul.u32 32, %s19
        %p939 = scmp.lt.s32.totalorder %s938, 63
        %s940 = scalar_select %p939, %s938, 63
        %s941 = smul.addr %s940, 8
        %s942 = scalar_lea.vmem %s7, %s941
      $region60: #{tpu_custom_call.1} parent=55 // pred_fallthru
        _
    $region56: #{tpu_custom_call.1} parent=5 // pred_fallthru
      _
  $region6: #{tpu_custom_call.1} parent=0 // loop_footer
    %s17 = sadd.s32 1, %s13
  $region7: #{tpu_custom_call.1} parent=0 // loop_footer_branch
    %12 = sbr.rel target = $region3
  $region8: #{tpu_custom_call.1} parent=0 // loop_exit
    _

</llo_original>
